<compile_context>
chip_gen: v7x
topology: tpu7x:2x2x1
jax: 0.10.0
libtpu: 0.0.40
codegen_flags: <defaults>
</compile_context>

<pallas_src>
import math

import jax
import jax.numpy as jnp
from jax.experimental import pallas as pl
from jax.experimental.pallas import tpu as pltpu


def _mlp_kernel(x_ref, w1_ref, b1_ref, w2_ref, b2_ref, w3_ref, b3_ref, o_ref):
    """Fused 3-layer MLP on one batch tile.

    Weights may be block-diagonal row-packed (math unchanged).  MXU operands
    use the weights' dtype (bf16 by default); accumulation is always f32.
    """
    cdt = w1_ref.dtype

    # In-kernel cast of x: one VPU pack per element, hidden under MXU cadence;
    # avoids a separate HBM read+write pass over x in the wrapper.
    x = x_ref[...].astype(cdt)

    # Layer 1: Linear + ReLU (f32 accumulation, f32 bias/ReLU).
    h1 = jnp.dot(x, w1_ref[...], preferred_element_type=jnp.float32)
    h1 = jnp.maximum(h1 + b1_ref[...], 0.0)

    # Layer 2: Linear + ReLU.
    h2 = jnp.dot(h1.astype(cdt), w2_ref[...], preferred_element_type=jnp.float32)
    h2 = jnp.maximum(h2 + b2_ref[...], 0.0)

    # Layer 3: Linear (p*3 outputs, left lane-sparse -- see header note).
    out = jnp.dot(h2.astype(cdt), w3_ref[...], preferred_element_type=jnp.float32)
    o_ref[...] = (out + b3_ref[...]).astype(o_ref.dtype)


def pack_params(params, *, pack=4, compute_dtype=jnp.bfloat16):
    """One-time (load-time) weight preparation -- hoisted out of the call path.

    * Casts MXU operands to `compute_dtype` (bf16 default; jnp.float32 for an
      exact-f32 path), biases to f32.
    * Row-packs `pack` batch rows per lane-row: W (in, out) ->
      blockdiag_p(W) (p*in, p*out); biases tiled p times along lanes.
      pack=4 fills the 256-wide MXU on v6e/v7x; use pack=2 on v5e (128-wide),
      pack=1 to disable packing.

    Weights are in (in_features, out_features) layout (transposed vs torch),
    so the kernel computes y = x @ W + b == torch's y = x @ W.T + b.
    """
    w1, b1, w2, b2, w3, b3 = params

    def wpack(w):
        w = jnp.asarray(w, compute_dtype)
        if pack == 1:
            return w
        return jax.scipy.linalg.block_diag(*([w] * pack))

    def bpack(b):
        b = jnp.asarray(b, jnp.float32).reshape(1, -1)
        return b if pack == 1 else jnp.tile(b, (1, pack))

    return (wpack(w1), bpack(b1), wpack(w2), bpack(b2), wpack(w3), bpack(b3))


def local_stiffness_mlp(x, packed_params, *, batch_tile=2048):
    """MLP forward in a single Pallas kernel, tiled over (packed) batch rows.

    x:              (batch, input_dim) float array.
    packed_params:  output of pack_params() (raw params == pack_params(pack=1)).
    batch_tile:     original batch rows per grid step (sweep 1024-4096;
                    use 512-1024 on v5e).
    """
    w1, b1, w2, b2, w3, b3 = packed_params
    B, D = x.shape
    Dp, Hp = w1.shape                  # packed dims: Dp = p*D, Hp = p*H
    if Dp % D != 0:
        raise ValueError("packed params incompatible with x feature dim")
    p = Dp // D
    Op = w3.shape[1]                   # p*O
    O = Op // p
    H = Hp // p
    out_dtype = x.dtype

    # ---- tiny pad ONLY when batch is not a multiple of the pack factor.
    # (Prefer B % pack == 0, or pack=1/2, to keep the wrapper copy-free.)
    rem = B % p
    if rem:
        x = jnp.pad(x, ((0, p - rem), (0, 0)))
    Bp = B + (p - rem if rem else 0)

    # Free row-major (bitcast) reshape: p original rows per packed lane-row.
    R = Bp // p
    xr = x.reshape(R, Dp)

    # ---- tile selection over packed rows.  Big tiles amortize the per-step
    # overhead; the ragged tail is handled by the cdiv grid (OOB writes drop),
    # so no padded copy of x is ever materialized for tiling.
    tile = max(1, batch_tile // p)
    if R <= tile:
        tile = R                                   # one full block (layout-legal for any R)
    else:
        tile = max(8, (tile // 8) * 8)             # sublane-aligned
        grid_len = pl.cdiv(R, tile)
        # v7x megacore balance: prefer an even number of (still-large) steps.
        min_tile = max(8, ((256 // p) // 8) * 8)   # ~256 original rows floor
        if grid_len % 2 == 1:
            alt = ((pl.cdiv(R, grid_len + 1) + 7) // 8) * 8
            if alt >= min_tile:
                tile = alt
    grid = (pl.cdiv(R, tile),)

    cbytes = jnp.dtype(w1.dtype).itemsize
    cost = pl.CostEstimate(
        flops=2 * Bp * (D * H + H * H + H * O),
        transcendentals=0,
        bytes_accessed=(
            Bp * D * x.dtype.itemsize                       # x read (in-kernel cast)
            + (Dp * Hp + Hp * Hp + Hp * Op) * cbytes        # packed weights read
            + (2 * Hp + Op) * 4                             # biases read (f32)
            + Bp * O * jnp.dtype(out_dtype).itemsize        # output write
        ),
    )

    out = pl.pallas_call(
        _mlp_kernel,
        out_shape=jax.ShapeDtypeStruct((R, Op), out_dtype),
        grid_spec=pltpu.PrefetchScalarGridSpec(
            num_scalar_prefetch=0,
            grid=grid,
            in_specs=[
                pl.BlockSpec((tile, Dp), lambda i: (i, 0)),   # x tile (packed rows)
                pl.BlockSpec((Dp, Hp), lambda i: (0, 0)),     # W1 (block-diag)
                pl.BlockSpec((1, Hp), lambda i: (0, 0)),      # b1
                pl.BlockSpec((Hp, Hp), lambda i: (0, 0)),     # W2 (block-diag)
                pl.BlockSpec((1, Hp), lambda i: (0, 0)),      # b2
                pl.BlockSpec((Hp, Op), lambda i: (0, 0)),     # W3 (block-diag)
                pl.BlockSpec((1, Op), lambda i: (0, 0)),      # b3
            ],
            out_specs=pl.BlockSpec((tile, Op), lambda i: (i, 0)),
        ),
        compiler_params=pltpu.CompilerParams(
            dimension_semantics=("parallel",),
        ),
        cost_estimate=cost,
    )(xr, w1, b1, w2, b2, w3, b3)

    out = out.reshape(Bp, O)           # free bitcast reshape back to (rows, 3)
    return out[:B] if rem else out


def init_params(key, input_dim, hidden_dim=64, out_dim=3, dtype=jnp.float32):
    """Deterministic init mimicking torch.nn.Linear (uniform +/- 1/sqrt(fan_in)).

    Weights are returned already transposed to (in_features, out_features).
    """
    def linear(k, fan_in, fan_out):
        kw, kb = jax.random.split(k)
        bound = 1.0 / math.sqrt(fan_in)
        w = jax.random.uniform(kw, (fan_in, fan_out), dtype, -bound, bound)
        b = jax.random.uniform(kb, (1, fan_out), dtype, -bound, bound)
        return w, b

    k1, k2, k3 = jax.random.split(key, 3)
    w1, b1 = linear(k1, input_dim, hidden_dim)
    w2, b2 = linear(k2, hidden_dim, hidden_dim)
    w3, b3 = linear(k3, hidden_dim, out_dim)
    return (w1, b1, w2, b2, w3, b3)


def reference_forward(x, params):
    w1, b1, w2, b2, w3, b3 = params
    h1 = jnp.maximum(x @ w1 + b1, 0.0)
    h2 = jnp.maximum(h1 @ w2 + b2, 0.0)
    return h2 @ w3 + b3


if __name__ == "__main__":
    key = jax.random.PRNGKey(0)
    kx1, kx2, kx3, kp = jax.random.split(key, 4)

    input_dim, hidden_dim = 16, 64
    params = init_params(kp, input_dim, hidden_dim)

    # ---- Test 1: default bf16 path, pack=4, ragged last grid block (no pad).
    packed_bf16 = pack_params(params, pack=4, compute_dtype=jnp.bfloat16)
    B1 = 200                                   # 200 % 4 == 0 -> copy-free; R=50
    x1 = jax.random.normal(kx1, (B1, input_dim), jnp.float32)
    out1 = jax.block_until_ready(
        local_stiffness_mlp(x1, packed_bf16, batch_tile=128)   # 2 steps, partial tail
    )
    ref1 = reference_forward(x1, params)
    assert out1.shape == (B1, 3)
    assert jnp.allclose(out1, ref1, atol=5e-2, rtol=5e-2), "bf16 packed path mismatch"

    # ---- Test 2: exact f32 path, pack=2 (v5e-style), single full block.
    packed_f32 = pack_params(params, pack=2, compute_dtype=jnp.float32)
    B2 = 50
    x2 = jax.random.normal(kx2, (B2, input_dim), jnp.float32)
    out2 = jax.block_until_ready(local_stiffness_mlp(x2, packed_f32))
    ref2 = reference_forward(x2, params)
    assert out2.shape == (B2, 3)
    assert jnp.allclose(out2, ref2, atol=1e-5, rtol=1e-5), "f32 packed path mismatch"

    # ---- Test 3: batch not divisible by pack (exercises the tiny-pad fallback).
    B3 = 6
    x3 = jax.random.normal(kx3, (B3, input_dim), jnp.float32)
    out3 = jax.block_until_ready(local_stiffness_mlp(x3, packed_bf16))
    ref3 = reference_forward(x3, params)
    assert out3.shape == (B3, 3)
    assert jnp.allclose(out3, ref3, atol=5e-2, rtol=5e-2), "pad-fallback path mismatch"

    print("KERNEL_OK")
</pallas_src>

<mosaic_0001>
module attributes {stable_mosaic.version = 11 : i64} {
  func.func @_mlp_kernel(%arg0: i32, %arg1: memref<32x64xf32, #tpu.memory_space<vmem>>, %arg2: memref<64x256xbf16, #tpu.memory_space<vmem>>, %arg3: memref<1x256xf32, #tpu.memory_space<vmem>>, %arg4: memref<256x256xbf16, #tpu.memory_space<vmem>>, %arg5: memref<1x256xf32, #tpu.memory_space<vmem>>, %arg6: memref<256x12xbf16, #tpu.memory_space<vmem>>, %arg7: memref<1x12xf32, #tpu.memory_space<vmem>>, %arg8: memref<32x12xf32, #tpu.memory_space<vmem>>) attributes {dimension_semantics = [#tpu.dimension_semantics<parallel>], iteration_bounds = array<i64: 2>, scalar_prefetch = 0 : i64, scratch_operands = 0 : i64, tpu.core_type = #tpu.core_type<tc>, window_params = [{transform_indices = @transform_0, window_bounds = array<i64: 32, 64>}, {pipeline_mode = #tpu.pipeline_mode<synchronous>, transform_indices = @transform_1, window_bounds = array<i64: 64, 256>}, {pipeline_mode = #tpu.pipeline_mode<synchronous>, transform_indices = @transform_2, window_bounds = array<i64: 1, 256>}, {pipeline_mode = #tpu.pipeline_mode<synchronous>, transform_indices = @transform_3, window_bounds = array<i64: 256, 256>}, {pipeline_mode = #tpu.pipeline_mode<synchronous>, transform_indices = @transform_4, window_bounds = array<i64: 1, 256>}, {pipeline_mode = #tpu.pipeline_mode<synchronous>, transform_indices = @transform_5, window_bounds = array<i64: 256, 12>}, {pipeline_mode = #tpu.pipeline_mode<synchronous>, transform_indices = @transform_6, window_bounds = array<i64: 1, 12>}, {transform_indices = @transform_7, window_bounds = array<i64: 32, 12>}]} {
    %c0 = arith.constant 0 : index
    %c0_0 = arith.constant 0 : index
    %0 = vector.load %arg1[%c0, %c0_0] : memref<32x64xf32, #tpu.memory_space<vmem>>, vector<32x64xf32>
    %1 = arith.truncf %0 : vector<32x64xf32> to vector<32x64xbf16>
    %c0_1 = arith.constant 0 : index
    %c0_2 = arith.constant 0 : index
    %2 = vector.load %arg2[%c0_1, %c0_2] : memref<64x256xbf16, #tpu.memory_space<vmem>>, vector<64x256xbf16>
    %cst = arith.constant dense<0.000000e+00> : vector<32x256xf32>
    %3 = tpu.matmul %1, %2, %cst {dimension_numbers = #tpu.dot_dimension_numbers<[1], [0], [0], [1], [0, 0, 1, 1], [], []>} : vector<32x64xbf16>, vector<64x256xbf16>, vector<32x256xf32> -> vector<32x256xf32>
    %c0_3 = arith.constant 0 : index
    %c0_4 = arith.constant 0 : index
    %4 = vector.load %arg3[%c0_3, %c0_4] : memref<1x256xf32, #tpu.memory_space<vmem>>, vector<1x256xf32>
    %5 = vector.broadcast %4 : vector<1x256xf32> to vector<32x256xf32>
    %6 = arith.addf %3, %5 : vector<32x256xf32>
    %cst_5 = arith.constant 0.000000e+00 : f32
    %7 = vector.broadcast %cst_5 : f32 to vector<32x256xf32>
    %8 = arith.maximumf %6, %7 : vector<32x256xf32>
    %9 = arith.truncf %8 : vector<32x256xf32> to vector<32x256xbf16>
    %c0_6 = arith.constant 0 : index
    %c0_7 = arith.constant 0 : index
    %10 = vector.load %arg4[%c0_6, %c0_7] : memref<256x256xbf16, #tpu.memory_space<vmem>>, vector<256x256xbf16>
    %cst_8 = arith.constant dense<0.000000e+00> : vector<32x256xf32>
    %11 = tpu.matmul %9, %10, %cst_8 {dimension_numbers = #tpu.dot_dimension_numbers<[1], [0], [0], [1], [0, 0, 1, 1], [], []>} : vector<32x256xbf16>, vector<256x256xbf16>, vector<32x256xf32> -> vector<32x256xf32>
    %c0_9 = arith.constant 0 : index
    %c0_10 = arith.constant 0 : index
    %12 = vector.load %arg5[%c0_9, %c0_10] : memref<1x256xf32, #tpu.memory_space<vmem>>, vector<1x256xf32>
    %13 = vector.broadcast %12 : vector<1x256xf32> to vector<32x256xf32>
    %14 = arith.addf %11, %13 : vector<32x256xf32>
    %cst_11 = arith.constant 0.000000e+00 : f32
    %15 = vector.broadcast %cst_11 : f32 to vector<32x256xf32>
    %16 = arith.maximumf %14, %15 : vector<32x256xf32>
    %17 = arith.truncf %16 : vector<32x256xf32> to vector<32x256xbf16>
    %c0_12 = arith.constant 0 : index
    %c0_13 = arith.constant 0 : index
    %18 = vector.load %arg6[%c0_12, %c0_13] : memref<256x12xbf16, #tpu.memory_space<vmem>>, vector<256x12xbf16>
    %cst_14 = arith.constant dense<0.000000e+00> : vector<32x12xf32>
    %19 = tpu.matmul %17, %18, %cst_14 {dimension_numbers = #tpu.dot_dimension_numbers<[1], [0], [0], [1], [0, 0, 1, 1], [], []>} : vector<32x256xbf16>, vector<256x12xbf16>, vector<32x12xf32> -> vector<32x12xf32>
    %c0_15 = arith.constant 0 : index
    %c0_16 = arith.constant 0 : index
    %20 = vector.load %arg7[%c0_15, %c0_16] : memref<1x12xf32, #tpu.memory_space<vmem>>, vector<1x12xf32>
    %21 = vector.broadcast %20 : vector<1x12xf32> to vector<32x12xf32>
    %22 = arith.addf %19, %21 : vector<32x12xf32>
    %c0_17 = arith.constant 0 : index
    %c0_18 = arith.constant 0 : index
    %23 = vector.load %arg8[%c0_17, %c0_18] : memref<32x12xf32, #tpu.memory_space<vmem>>, vector<32x12xf32>
    tpu.vector_store %arg8[%c0_17, %c0_18], %22 {strides = array<i32>} : memref<32x12xf32, #tpu.memory_space<vmem>>, vector<32x12xf32>,
    return
  }
  func.func @transform_0(%arg0: i32) -> (i32, i32) {
    %c0_i32 = arith.constant 0 : i32
    %c0_i32_0 = arith.constant 0 : i32
    return %arg0, %c0_i32 : i32, i32
  }
  func.func @transform_1(%arg0: i32) -> (i32, i32) {
    %c0_i32 = arith.constant 0 : i32
    %c0_i32_0 = arith.constant 0 : i32
    %c0_i32_1 = arith.constant 0 : i32
    return %c0_i32, %c0_i32_0 : i32, i32
  }
  func.func @transform_2(%arg0: i32) -> (i32, i32) {
    %c0_i32 = arith.constant 0 : i32
    %c0_i32_0 = arith.constant 0 : i32
    %c0_i32_1 = arith.constant 0 : i32
    return %c0_i32, %c0_i32_0 : i32, i32
  }
  func.func @transform_3(%arg0: i32) -> (i32, i32) {
    %c0_i32 = arith.constant 0 : i32
    %c0_i32_0 = arith.constant 0 : i32
    %c0_i32_1 = arith.constant 0 : i32
    return %c0_i32, %c0_i32_0 : i32, i32
  }
  func.func @transform_4(%arg0: i32) -> (i32, i32) {
    %c0_i32 = arith.constant 0 : i32
    %c0_i32_0 = arith.constant 0 : i32
    %c0_i32_1 = arith.constant 0 : i32
    return %c0_i32, %c0_i32_0 : i32, i32
  }
  func.func @transform_5(%arg0: i32) -> (i32, i32) {
    %c0_i32 = arith.constant 0 : i32
    %c0_i32_0 = arith.constant 0 : i32
    %c0_i32_1 = arith.constant 0 : i32
    return %c0_i32, %c0_i32_0 : i32, i32
  }
  func.func @transform_6(%arg0: i32) -> (i32, i32) {
    %c0_i32 = arith.constant 0 : i32
    %c0_i32_0 = arith.constant 0 : i32
    %c0_i32_1 = arith.constant 0 : i32
    return %c0_i32, %c0_i32_0 : i32, i32
  }
  func.func @transform_7(%arg0: i32) -> (i32, i32) {
    %c0_i32 = arith.constant 0 : i32
    %c0_i32_0 = arith.constant 0 : i32
    return %arg0, %c0_i32 : i32, i32
  }
}

</mosaic_0001>

<llo_original>
// kernel: tpu_custom_call.1
$region0: #{tpu_custom_call.1}
  #allocation0 [shape = 'u32[]', space=smem, size = 0x4, offset = 0x4, fixed_abs, tag = 'smem constant byte address 0x4 - core index']
  #allocation1 [shape = 'u32[144,128]{1,0:T(1,128)}', space=vmem, size = 0x12000, scoped, tag = 'internal scratch']
  %s0 = inlined_call_operand.vmem [shape: f32[50,64], index: 0, kind: input, shape index: {}]
  %s1 = inlined_call_operand.vmem [shape: bf16[64,256], index: 1, kind: input, shape index: {}]
  %s2 = inlined_call_operand.vmem [shape: f32[1,256], index: 2, kind: input, shape index: {}]
  %s3 = inlined_call_operand.hbm [shape: bf16[256,256], index: 3, kind: input, shape index: {}]
  %s4 = inlined_call_operand.vmem [shape: f32[1,256], index: 4, kind: input, shape index: {}]
  %s5 = inlined_call_operand.vmem [shape: bf16[256,12], index: 5, kind: input, shape index: {}]
  %s6 = inlined_call_operand.vmem [shape: f32[1,12], index: 6, kind: input, shape index: {}]
  %s7 = inlined_call_operand.vmem [shape: f32[50,12], index: 7, kind: output, shape index: {}]
  %s8 = sld [smem:[#allocation0]]
  $region113: #{tpu_custom_call.1} parent=0
    _
  %s10 = ssub.s32 1, %s8
  %s11 = scalar_select 0, %s10, %s8
  $region1: #{tpu_custom_call.1} parent=0
    #allocation2 [shape = 'u8[131072]{0}', space=vmem, size = 0x20000, scoped, tag = 'input window, operand 3, single buffered']
    #allocation3 [shape = 's32[2]{0}', space=sflag, size = 0x8, scoped, tag = 'scoped memory for tpu_custom_call.1']
    #allocation4 [shape = 'u8[32768]{0}', space=vmem, size = 0x8000, scoped, tag = 'output window, operand 0']
    %12 = vsyncpa [#allocation3], 0
    loop: start=0, step=1, limit=4
    $region2: #{tpu_custom_call.1} parent=1 // loop_pre_header
      _
    $region3: #{tpu_custom_call.1} parent=1 // loop_header
      %s14 = sphi 0, %s18
      %p15 = scmp.ge.s32.totalorder %s14, 4
      %s24 = sphi 0, %s26
      %s27 = sphi 0, %s24
      %s28 = sphi 0, %s27
      %s44 = sphi 0, %s28
      %s48 = sphi 0, %s48
      %s50 = sphi 0, %s48
      %s51 = sphi 0, %s50
      %s65 = sphi 0, %s51
      %s69 = sphi 0, %s69
      %s71 = sphi 0, %s69
      %s72 = sphi 0, %s71
      %s86 = sphi 0, %s72
      %s90 = sphi 0, %s90
      %s92 = sphi 0, %s90
      %s93 = sphi 0, %s92
      %s107 = sphi 0, %s93
      %s111 = sphi 0, %s111
      %s113 = sphi 0, %s111
      %s114 = sphi 0, %s113
      %s128 = sphi 0, %s114
      %s132 = sphi 0, %s132
      %s134 = sphi 0, %s132
      %s135 = sphi 0, %s134
      %s149 = sphi 0, %s135
      %s153 = sphi 0, %s153
      %s155 = sphi 0, %s153
      %s156 = sphi 0, %s155
      %s170 = sphi 0, %s156
      %s176 = sphi 0, %s178
      %s179 = sphi 0, %s176
      %s180 = sphi 0, %s179
      %s196 = sphi 0, %s180
    $region4: #{tpu_custom_call.1} parent=1 // loop_header_branch
      %17 = sbr.rel (%p15) target = $region8
    $region5: #{tpu_custom_call.1} parent=1 // loop_body
      %s19 = ssub.s32 %s14, 1
      %s20 = ssub.s32 %s14, 2
      %s21 = sadd.s32 %s14, 1
      %s22 = ssub.s32 %s14, %s21
      %p23 = scmp.eq.s32.totalorder %s22, 0
      %s25 = sadd.s32 %s24, 1
      %s26 = scalar_select %p23, %s24, %s25
      %p29 = pneg %p23
      %p30 = scmp.eq.s32.totalorder %s14, 1
      %p31 = por %p29, %p30
      %p32 = scmp.ne.s32.totalorder %s24, %s27
      %p33 = scmp.eq.s32.totalorder %s14, 0
      %p34 = por %p32, %p33
      %p35 = scmp.ne.s32.totalorder %s24, %s27
      %p36 = scmp.eq.s32.totalorder %s19, 1
      %p37 = por %p35, %p36
      %p38 = scmp.ne.s32.totalorder %s27, %s28
      %p39 = scmp.eq.s32.totalorder %s19, 0
      %p40 = por %p38, %p39
      %p41 = scmp.ne.s32.totalorder %s27, %s28
      %p42 = scmp.eq.s32.totalorder %s20, 1
      %p43 = por %p41, %p42
      %p45 = scmp.ne.s32.totalorder %s28, %s44
      %p46 = scmp.eq.s32.totalorder %s20, 0
      %p47 = por %p45, %p46
      %s49 = sadd.s32 %s48, 1
      %p52 = scmp.eq.s32.totalorder %s14, 1
      %p53 = scmp.ne.s32.totalorder %s48, %s50
      %p54 = scmp.eq.s32.totalorder %s14, 0
      %p55 = por %p53, %p54
      %p56 = scmp.ne.s32.totalorder %s48, %s50
      %p57 = scmp.eq.s32.totalorder %s19, 1
      %p58 = por %p56, %p57
      %p59 = scmp.ne.s32.totalorder %s50, %s51
      %p60 = scmp.eq.s32.totalorder %s19, 0
      %p61 = por %p59, %p60
      %p62 = scmp.ne.s32.totalorder %s50, %s51
      %p63 = scmp.eq.s32.totalorder %s20, 1
      %p64 = por %p62, %p63
      %p66 = scmp.ne.s32.totalorder %s51, %s65
      %p67 = scmp.eq.s32.totalorder %s20, 0
      %p68 = por %p66, %p67
      %s70 = sadd.s32 %s69, 1
      %p73 = scmp.eq.s32.totalorder %s14, 1
      %p74 = scmp.ne.s32.totalorder %s69, %s71
      %p75 = scmp.eq.s32.totalorder %s14, 0
      %p76 = por %p74, %p75
      %p77 = scmp.ne.s32.totalorder %s69, %s71
      %p78 = scmp.eq.s32.totalorder %s19, 1
      %p79 = por %p77, %p78
      %p80 = scmp.ne.s32.totalorder %s71, %s72
      %p81 = scmp.eq.s32.totalorder %s19, 0
      %p82 = por %p80, %p81
      %p83 = scmp.ne.s32.totalorder %s71, %s72
      %p84 = scmp.eq.s32.totalorder %s20, 1
      %p85 = por %p83, %p84
      %p87 = scmp.ne.s32.totalorder %s72, %s86
      %p88 = scmp.eq.s32.totalorder %s20, 0
      %p89 = por %p87, %p88
      %s91 = sadd.s32 %s90, 1
      %p94 = scmp.eq.s32.totalorder %s14, 1
      %p95 = scmp.ne.s32.totalorder %s90, %s92
      %p96 = scmp.eq.s32.totalorder %s14, 0
      %p97 = por %p95, %p96
      %p98 = scmp.ne.s32.totalorder %s90, %s92
      %p99 = scmp.eq.s32.totalorder %s19, 1
      %p100 = por %p98, %p99
      %p101 = scmp.ne.s32.totalorder %s92, %s93
      %p102 = scmp.eq.s32.totalorder %s19, 0
      %p103 = por %p101, %p102
      %p104 = scmp.ne.s32.totalorder %s92, %s93
      %p105 = scmp.eq.s32.totalorder %s20, 1
      %p106 = por %p104, %p105
      %p108 = scmp.ne.s32.totalorder %s93, %s107
      %p109 = scmp.eq.s32.totalorder %s20, 0
      %p110 = por %p108, %p109
      %s112 = sadd.s32 %s111, 1
      %p115 = scmp.eq.s32.totalorder %s14, 1
      %p116 = scmp.ne.s32.totalorder %s111, %s113
      %p117 = scmp.eq.s32.totalorder %s14, 0
      %p118 = por %p116, %p117
      %p119 = scmp.ne.s32.totalorder %s111, %s113
      %p120 = scmp.eq.s32.totalorder %s19, 1
      %p121 = por %p119, %p120
      %p122 = scmp.ne.s32.totalorder %s113, %s114
      %p123 = scmp.eq.s32.totalorder %s19, 0
      %p124 = por %p122, %p123
      %p125 = scmp.ne.s32.totalorder %s113, %s114
      %p126 = scmp.eq.s32.totalorder %s20, 1
      %p127 = por %p125, %p126
      %p129 = scmp.ne.s32.totalorder %s114, %s128
      %p130 = scmp.eq.s32.totalorder %s20, 0
      %p131 = por %p129, %p130
      %s133 = sadd.s32 %s132, 1
      %p136 = scmp.eq.s32.totalorder %s14, 1
      %p137 = scmp.ne.s32.totalorder %s132, %s134
      %p138 = scmp.eq.s32.totalorder %s14, 0
      %p139 = por %p137, %p138
      %p140 = scmp.ne.s32.totalorder %s132, %s134
      %p141 = scmp.eq.s32.totalorder %s19, 1
      %p142 = por %p140, %p141
      %p143 = scmp.ne.s32.totalorder %s134, %s135
      %p144 = scmp.eq.s32.totalorder %s19, 0
      %p145 = por %p143, %p144
      %p146 = scmp.ne.s32.totalorder %s134, %s135
      %p147 = scmp.eq.s32.totalorder %s20, 1
      %p148 = por %p146, %p147
      %p150 = scmp.ne.s32.totalorder %s135, %s149
      %p151 = scmp.eq.s32.totalorder %s20, 0
      %p152 = por %p150, %p151
      %s154 = sadd.s32 %s153, 1
      %p157 = scmp.eq.s32.totalorder %s14, 1
      %p158 = scmp.ne.s32.totalorder %s153, %s155
      %p159 = scmp.eq.s32.totalorder %s14, 0
      %p160 = por %p158, %p159
      %p161 = scmp.ne.s32.totalorder %s153, %s155
      %p162 = scmp.eq.s32.totalorder %s19, 1
      %p163 = por %p161, %p162
      %p164 = scmp.ne.s32.totalorder %s155, %s156
      %p165 = scmp.eq.s32.totalorder %s19, 0
      %p166 = por %p164, %p165
      %p167 = scmp.ne.s32.totalorder %s155, %s156
      %p168 = scmp.eq.s32.totalorder %s20, 1
      %p169 = por %p167, %p168
      %p171 = scmp.ne.s32.totalorder %s156, %s170
      %p172 = scmp.eq.s32.totalorder %s20, 0
      %p173 = por %p171, %p172
      %s174 = ssub.s32 %s14, %s21
      %p175 = scmp.eq.s32.totalorder %s174, 0
      %s177 = sadd.s32 %s176, 1
      %s178 = scalar_select %p175, %s176, %s177
      %p181 = pneg %p175
      %p182 = scmp.eq.s32.totalorder %s14, 1
      %p183 = por %p181, %p182
      %p184 = scmp.ne.s32.totalorder %s176, %s179
      %p185 = scmp.eq.s32.totalorder %s14, 0
      %p186 = por %p184, %p185
      %p187 = scmp.ne.s32.totalorder %s176, %s179
      %p188 = scmp.eq.s32.totalorder %s19, 1
      %p189 = por %p187, %p188
      %p190 = scmp.ne.s32.totalorder %s179, %s180
      %p191 = scmp.eq.s32.totalorder %s19, 0
      %p192 = por %p190, %p191
      %p193 = scmp.ne.s32.totalorder %s179, %s180
      %p194 = scmp.eq.s32.totalorder %s20, 1
      %p195 = por %p193, %p194
      %p197 = scmp.ne.s32.totalorder %s180, %s196
      %p198 = scmp.eq.s32.totalorder %s20, 0
      %p199 = por %p197, %p198
      %p200 = scmp.le.s32.totalorder 1, %s14
      %p201 = scmp.lt.s32.totalorder %s14, 3
      %p202 = pnand %p200, %p201
      %p203 = pneg %p202
      // Predicated region
      $region9: #{tpu_custom_call.1} parent=5 // pred_check
        _
      $region10: #{tpu_custom_call.1} parent=5 // pred_check_branch
        %205 = sbr.rel (%p202) target = $region12
      $region11: #{tpu_custom_call.1} parent=5 // pred_region
        %s206 = ssub.s32 %s14, 1
        // Predicated region
        $region13: #{tpu_custom_call.1} parent=11 // pred_check
          %p207 = pneg %p61
        $region14: #{tpu_custom_call.1} parent=11 // pred_check_branch
          %209 = sbr.rel (%p207) target = $region16
        $region15: #{tpu_custom_call.1} parent=11 // pred_region
          _
        $region16: #{tpu_custom_call.1} parent=11 // pred_fallthru
          _
        // Predicated region
        $region17: #{tpu_custom_call.1} parent=11 // pred_check
          %p210 = pneg %p82
        $region18: #{tpu_custom_call.1} parent=11 // pred_check_branch
          %212 = sbr.rel (%p210) target = $region20
        $region19: #{tpu_custom_call.1} parent=11 // pred_region
          _
        $region20: #{tpu_custom_call.1} parent=11 // pred_fallthru
          _
        // Predicated region
        $region21: #{tpu_custom_call.1} parent=11 // pred_check
          %p213 = pneg %p103
        $region22: #{tpu_custom_call.1} parent=11 // pred_check_branch
          %215 = sbr.rel (%p213) target = $region24
        $region23: #{tpu_custom_call.1} parent=11 // pred_region
          %s217 = ssub.s32 4096, 4096
          %218 = vsyncadd [#allocation3], %s217
          %s219 = sshll.u32 [#allocation2], 4
          %s220 = int_to_ptr.vmem [resolvable:$true] %s219
          %225 = dma.hbm_to_vmem [thread:$0]  %s3, 4096, %s220, [#allocation3], 128, 128, 8
        $region24: #{tpu_custom_call.1} parent=11 // pred_fallthru
          _
        // Predicated region
        $region25: #{tpu_custom_call.1} parent=11 // pred_check
          %p226 = pneg %p124
        $region26: #{tpu_custom_call.1} parent=11 // pred_check_branch
          %228 = sbr.rel (%p226) target = $region28
        $region27: #{tpu_custom_call.1} parent=11 // pred_region
          _
        $region28: #{tpu_custom_call.1} parent=11 // pred_fallthru
          _
        // Predicated region
        $region29: #{tpu_custom_call.1} parent=11 // pred_check
          %p229 = pneg %p145
        $region30: #{tpu_custom_call.1} parent=11 // pred_check_branch
          %231 = sbr.rel (%p229) target = $region32
        $region31: #{tpu_custom_call.1} parent=11 // pred_region
          _
        $region32: #{tpu_custom_call.1} parent=11 // pred_fallthru
          _
        // Predicated region
        $region33: #{tpu_custom_call.1} parent=11 // pred_check
          %p232 = pneg %p166
        $region34: #{tpu_custom_call.1} parent=11 // pred_check_branch
          %234 = sbr.rel (%p232) target = $region36
        $region35: #{tpu_custom_call.1} parent=11 // pred_region
          _
        $region36: #{tpu_custom_call.1} parent=11 // pred_fallthru
          _
      $region12: #{tpu_custom_call.1} parent=5 // pred_fallthru
        _
      %p235 = scmp.lt.s32.totalorder %s14, 2
      // Predicated region
      $region37: #{tpu_custom_call.1} parent=5 // pred_check
        %p236 = pneg %p235
      $region38: #{tpu_custom_call.1} parent=5 // pred_check_branch
        %238 = sbr.rel (%p236) target = $region40
      $region39: #{tpu_custom_call.1} parent=5 // pred_region
        // Predicated region
        $region41: #{tpu_custom_call.1} parent=39 // pred_check
          %p239 = pneg %p34
        $region42: #{tpu_custom_call.1} parent=39 // pred_check_branch
          %241 = sbr.rel (%p239) target = $region44
        $region43: #{tpu_custom_call.1} parent=39 // pred_region
          %s242 = smul.u32 4, %s14
          %s243 = ssub.s32 7, %s242
          %p244 = scmp.lt.s32.totalorder %s243, 4
          %s245 = scalar_select %p244, %s243, 4
          %s246 = smul.u32 128, %s245
          %p247 = scmp.lt.s32.totalorder %s242, 6
          %s248 = scalar_select %p247, %s242, 6
          %s249 = smul.addr %s248, 8
          %s250 = scalar_lea.vmem %s0, %s249
          %s251 = smul.u32 4, %s14
          %s252 = ssub.s32 7, %s251
          %p253 = scmp.lt.s32.totalorder %s252, 4
          %s254 = scalar_select %p253, %s252, 4
          %s255 = smul.u32 128, %s254
        $region44: #{tpu_custom_call.1} parent=39 // pred_fallthru
          _
      $region40: #{tpu_custom_call.1} parent=5 // pred_fallthru
        _
      %p256 = scmp.le.s32.totalorder 1, %s14
      %p257 = scmp.lt.s32.totalorder %s14, 3
      %p258 = pnand %p256, %p257
      %p259 = pneg %p258
      // Predicated region
      $region45: #{tpu_custom_call.1} parent=5 // pred_check
        _
      $region46: #{tpu_custom_call.1} parent=5 // pred_check_branch
        %261 = sbr.rel (%p258) target = $region48
      $region47: #{tpu_custom_call.1} parent=5 // pred_region
        %s262 = ssub.s32 %s14, 1
        // Predicated region
        $region49: #{tpu_custom_call.1} parent=47 // pred_check
          %p263 = pneg %p103
        $region50: #{tpu_custom_call.1} parent=47 // pred_check_branch
          %265 = sbr.rel (%p263) target = $region52
        $region51: #{tpu_custom_call.1} parent=47 // pred_region
          %266 = dma.done [#allocation3], 4096
        $region52: #{tpu_custom_call.1} parent=47 // pred_fallthru
          _
        %s267 = smul.u32 4, %s19
        %s268 = ssub.s32 7, %s267
        %p269 = scmp.lt.s32.totalorder %s268, 4
        %s270 = scalar_select %p269, %s268, 4
        %s271 = smul.u32 128, %s270
        %p272 = scmp.lt.s32.totalorder %s267, 6
        %s273 = scalar_select %p272, %s267, 6
        %s274 = smul.addr %s273, 8
        %s275 = scalar_lea.vmem %s0, %s274
        %p276 = pneg %p40
        %p277 = pneg %p37
        %p278 = pneg %p61
        %p279 = pneg %p58
        %p280 = pneg %p82
        %p281 = pneg %p79
        %p282 = pneg %p103
        %p283 = pneg %p100
        %p284 = pneg %p124
        %p285 = pneg %p121
        %p286 = pneg %p145
        %p287 = pneg %p142
        %p288 = pneg %p166
        %p289 = pneg %p163
        %p290 = pneg %p192
        %p291 = pneg %p189
        %s292 = sand.u32 %s179, 1
        %s293 = sand.u32 %s179, 1
        %s294 = smul.addr %s293, 32
        %s295 = scalar_lea.vmem [#allocation4], %s294
        %s296 = smul.u32 4, %s19
        %s297 = ssub.s32 7, %s296
        %p298 = scmp.lt.s32.totalorder %s297, 4
        %s299 = scalar_select %p298, %s297, 4
        %s300 = smul.u32 128, %s299
        %p301 = scmp.lt.s32.totalorder %s296, 6
        %s302 = scalar_select %p301, %s296, 6
        %s303 = smul.addr %s302, 8
        %s304 = scalar_lea.vmem %s0, %s303
        %s305 = smul.u32 4, %s19
        %s306 = ssub.s32 7, %s305
        %p307 = scmp.lt.s32.totalorder %s306, 4
        %s308 = scalar_select %p307, %s306, 4
        %s309 = smul.u32 128, %s308
        %s310 = smul.u32 4, %s19
        %s311 = ssub.s32 7, %s310
        %p312 = scmp.lt.s32.totalorder %s311, 4
        %s313 = scalar_select %p312, %s311, 4
        %s314 = smul.u32 128, %s313
        %v316 = vld [vmem:[%s304] sm:$0xff]
        %v317 = vld [vmem:[%s304 + $0x8] sm:$0xff]
        %v318 = vld [vmem:[%s304 + $0x10] sm:$0xff]
        %v319 = vld [vmem:[%s304 + $0x18] sm:$0xff]
        %v320 = vpack.c.bf16 %v317, %v316
        %v321 = vpack.c.bf16 %v319, %v318
        %v322 = vld [vmem:[%s1] sm:$0xff]
        %v323 = vld [vmem:[%s1 + $0x8] sm:$0xff]
        %v324 = vld [vmem:[%s1 + $0x10] sm:$0xff]
        %v325 = vld [vmem:[%s1 + $0x18] sm:$0xff]
        %v326 = vld [vmem:[%s1 + $0x20] sm:$0xff]
        %v327 = vld [vmem:[%s1 + $0x28] sm:$0xff]
        %v328 = vld [vmem:[%s1 + $0x30] sm:$0xff]
        %v329 = vld [vmem:[%s1 + $0x38] sm:$0xff]
        %v330 = vld [vmem:[%s2] sm:$0x3]
        %v332 = vlaneseq
        %v333 = vshrl.u32 %v332, 7
        %v334 = vsub.s32 0, %v333
        %v335 = vrot.slane %v330, %v334
        %v336 = vlaneseq
        %v337 = vshrl.u32 %v336, 7
        %v338 = vsub.s32 1, %v337
        %v339 = vrot.slane %v330, %v338
        %v350 = vunpack.c.l.b16 %v322
        %v351 = vunpack.c.h.b16 %v322
        %v352 = vunpack.c.l.b16 %v323
        %v353 = vunpack.c.h.b16 %v323
        %v354 = vunpack.c.l.b16 %v324
        %v355 = vunpack.c.h.b16 %v324
        %v356 = vunpack.c.l.b16 %v325
        %v357 = vunpack.c.h.b16 %v325
        %v358 = vunpack.c.l.b16 %v326
        %v359 = vunpack.c.h.b16 %v326
        %v360 = vunpack.c.l.b16 %v327
        %v361 = vunpack.c.h.b16 %v327
        %v362 = vunpack.c.l.b16 %v328
        %v363 = vunpack.c.h.b16 %v328
        %v364 = vunpack.c.l.b16 %v329
        %v365 = vunpack.c.h.b16 %v329
        %v366 = vpack.c.b16 %v352, %v350
        %v367 = vpack.c.b16 %v353, %v351
        %v368 = vpack.c.b16 %v356, %v354
        %v369 = vpack.c.b16 %v357, %v355
        %v370 = vpack.c.b16 %v360, %v358
        %v371 = vpack.c.b16 %v361, %v359
        %v372 = vpack.c.b16 %v364, %v362
        %v373 = vpack.c.b16 %v365, %v363
        %vm382 = vcmask 523264
        %v384 = vsel %vm382, %v320, 0
        %v387 = vsel %vm382, %v321, 0
        %389 = vmatprep.subr.bf16.mxu0 %v367
        %390 = vmatpush1.bf16.msra.mxu0 %v366
        %391 = vmatprep.subr.bf16.mxu0 %v369
        %392 = vmatpush1.bf16.msra.mxu0 %v368
        %393 = vmatprep.subr.bf16.mxu0 %v371
        %394 = vmatpush1.bf16.msra.mxu0 %v370
        %395 = vmatprep.subr.bf16.mxu0 %v373
        %396 = vmatpush1.bf16.msra.mxu0 %v372
        %397 = vmatprep.subr.bf16.mxu0 0
        %398 = vmatpush1.bf16.msra.mxu0 0
        %399 = vmatprep.subr.bf16.mxu0 0
        %400 = vmatpush1.bf16.msra.mxu0 0
        %401 = vmatprep.subr.bf16.mxu0 0
        %402 = vmatpush1.bf16.msra.mxu0 0
        %403 = vmatprep.subr.bf16.mxu0 0
        %404 = vmatpush1.bf16.msra.mxu0 0
        %405 = vmatprep.subr.bf16.mxu0 0
        %406 = vmatpush1.bf16.msra.mxu0 0
        %407 = vmatprep.subr.bf16.mxu0 0
        %408 = vmatpush1.bf16.msra.mxu0 0
        %409 = vmatprep.subr.bf16.mxu0 0
        %410 = vmatpush1.bf16.msra.mxu0 0
        %411 = vmatprep.subr.bf16.mxu0 0
        %412 = vmatpush1.bf16.msra.mxu0 0
        %413 = vmatprep.subr.bf16.mxu0 0
        %414 = vmatpush1.bf16.msra.mxu0 0
        %415 = vmatprep.subr.bf16.mxu0 0
        %416 = vmatpush1.bf16.msra.mxu0 0
        %417 = vmatprep.subr.bf16.mxu0 0
        %418 = vmatpush1.bf16.msra.mxu0 0
        %419 = vmatprep.subr.bf16.mxu0 0
        %420 = vmatpush1.bf16.msra.mxu0 0
        %421 = vmatprep.mubr.bf16.mxu0 0
        %422 = vmatmul.mubr.bf16.gmra.mrb[0].mxu0 %v384
        %v423 = vpop.f32.mrb[0].mxu0
        %v424 = vadd.f32 %v335, %v423
        %v425 = vpop.f32.mrb[0].mxu0
        %v426 = vadd.f32 %v339, %v425
        %v427 = vpop.f32.mrb[0].mxu0
        %v428 = vadd.f32 %v335, %v427
        %v429 = vpop.f32.mrb[0].mxu0
        %v430 = vadd.f32 %v339, %v429
        %431 = vmatprep.mubr.bf16.mxu0 0
        %432 = vmatmul.mubr.bf16.gmra.mrb[0].mxu0 %v387
        %v433 = vpop.f32.mrb[0].mxu0
        %v434 = vadd.f32 %v335, %v433
        %v435 = vpop.f32.mrb[0].mxu0
        %v436 = vadd.f32 %v339, %v435
        %v437 = vpop.f32.mrb[0].mxu0
        %v438 = vadd.f32 %v335, %v437
        %v439 = vpop.f32.mrb[0].mxu0
        %v440 = vadd.f32 %v339, %v439
        %441 = vdwg.mxu0
        %v442 = vmax.f32 %v424, 0.0
        %v443 = vmax.f32 %v426, 0.0
        %v444 = vmax.f32 %v428, 0.0
        %v445 = vmax.f32 %v430, 0.0
        %v446 = vmax.f32 %v434, 0.0
        %v447 = vmax.f32 %v436, 0.0
        %v448 = vmax.f32 %v438, 0.0
        %v449 = vmax.f32 %v440, 0.0
        %v450 = vpack.c.bf16 %v444, %v442
        %v451 = vpack.c.bf16 %v445, %v443
        %v452 = vpack.c.bf16 %v448, %v446
        %v453 = vpack.c.bf16 %v449, %v447
        %v454 = vld [vmem:[#allocation2] sm:$0xff]
        %v455 = vld [vmem:[#allocation2 + $0x8] sm:$0xff]
        %v456 = vld [vmem:[#allocation2 + $0x10] sm:$0xff]
        %v457 = vld [vmem:[#allocation2 + $0x18] sm:$0xff]
        %v458 = vld [vmem:[#allocation2 + $0x20] sm:$0xff]
        %v459 = vld [vmem:[#allocation2 + $0x28] sm:$0xff]
        %v460 = vld [vmem:[#allocation2 + $0x30] sm:$0xff]
        %v461 = vld [vmem:[#allocation2 + $0x38] sm:$0xff]
        %v462 = vld [vmem:[#allocation2 + $0x40] sm:$0xff]
        %v463 = vld [vmem:[#allocation2 + $0x48] sm:$0xff]
        %v464 = vld [vmem:[#allocation2 + $0x50] sm:$0xff]
        %v465 = vld [vmem:[#allocation2 + $0x58] sm:$0xff]
        %v466 = vld [vmem:[#allocation2 + $0x60] sm:$0xff]
        %v467 = vld [vmem:[#allocation2 + $0x68] sm:$0xff]
        %v468 = vld [vmem:[#allocation2 + $0x70] sm:$0xff]
        %v469 = vld [vmem:[#allocation2 + $0x78] sm:$0xff]
        %v470 = vld [vmem:[#allocation2 + $0x80] sm:$0xff]
        %v471 = vld [vmem:[#allocation2 + $0x88] sm:$0xff]
        %v472 = vld [vmem:[#allocation2 + $0x90] sm:$0xff]
        %v473 = vld [vmem:[#allocation2 + $0x98] sm:$0xff]
        %v474 = vld [vmem:[#allocation2 + $0xa0] sm:$0xff]
        %v475 = vld [vmem:[#allocation2 + $0xa8] sm:$0xff]
        %v476 = vld [vmem:[#allocation2 + $0xb0] sm:$0xff]
        %v477 = vld [vmem:[#allocation2 + $0xb8] sm:$0xff]
        %v478 = vld [vmem:[#allocation2 + $0xc0] sm:$0xff]
        %v479 = vld [vmem:[#allocation2 + $0xc8] sm:$0xff]
        %v480 = vld [vmem:[#allocation2 + $0xd0] sm:$0xff]
        %v481 = vld [vmem:[#allocation2 + $0xd8] sm:$0xff]
        %v482 = vld [vmem:[#allocation2 + $0xe0] sm:$0xff]
        %v483 = vld [vmem:[#allocation2 + $0xe8] sm:$0xff]
        %v484 = vld [vmem:[#allocation2 + $0xf0] sm:$0xff]
        %v485 = vld [vmem:[#allocation2 + $0xf8] sm:$0xff]
        %v486 = vld [vmem:[%s4] sm:$0x3]
        %v488 = vlaneseq
        %v489 = vshrl.u32 %v488, 7
        %v490 = vsub.s32 0, %v489
        %v491 = vrot.slane %v486, %v490
        %v492 = vlaneseq
        %v493 = vshrl.u32 %v492, 7
        %v494 = vsub.s32 1, %v493
        %v495 = vrot.slane %v486, %v494
        %v530 = vunpack.c.l.b16 %v454
        %v531 = vunpack.c.h.b16 %v454
        %v532 = vunpack.c.l.b16 %v455
        %v533 = vunpack.c.h.b16 %v455
        %v534 = vunpack.c.l.b16 %v456
        %v535 = vunpack.c.h.b16 %v456
        %v536 = vunpack.c.l.b16 %v457
        %v537 = vunpack.c.h.b16 %v457
        %v538 = vunpack.c.l.b16 %v458
        %v539 = vunpack.c.h.b16 %v458
        %v540 = vunpack.c.l.b16 %v459
        %v541 = vunpack.c.h.b16 %v459
        %v542 = vunpack.c.l.b16 %v460
        %v543 = vunpack.c.h.b16 %v460
        %v544 = vunpack.c.l.b16 %v461
        %v545 = vunpack.c.h.b16 %v461
        %v546 = vunpack.c.l.b16 %v462
        %v547 = vunpack.c.h.b16 %v462
        %v548 = vunpack.c.l.b16 %v463
        %v549 = vunpack.c.h.b16 %v463
        %v550 = vunpack.c.l.b16 %v464
        %v551 = vunpack.c.h.b16 %v464
        %v552 = vunpack.c.l.b16 %v465
        %v553 = vunpack.c.h.b16 %v465
        %v554 = vunpack.c.l.b16 %v466
        %v555 = vunpack.c.h.b16 %v466
        %v556 = vunpack.c.l.b16 %v467
        %v557 = vunpack.c.h.b16 %v467
        %v558 = vunpack.c.l.b16 %v468
        %v559 = vunpack.c.h.b16 %v468
        %v560 = vunpack.c.l.b16 %v469
        %v561 = vunpack.c.h.b16 %v469
        %v562 = vunpack.c.l.b16 %v470
        %v563 = vunpack.c.h.b16 %v470
        %v564 = vunpack.c.l.b16 %v471
        %v565 = vunpack.c.h.b16 %v471
        %v566 = vunpack.c.l.b16 %v472
        %v567 = vunpack.c.h.b16 %v472
        %v568 = vunpack.c.l.b16 %v473
        %v569 = vunpack.c.h.b16 %v473
        %v570 = vunpack.c.l.b16 %v474
        %v571 = vunpack.c.h.b16 %v474
        %v572 = vunpack.c.l.b16 %v475
        %v573 = vunpack.c.h.b16 %v475
        %v574 = vunpack.c.l.b16 %v476
        %v575 = vunpack.c.h.b16 %v476
        %v576 = vunpack.c.l.b16 %v477
        %v577 = vunpack.c.h.b16 %v477
        %v578 = vunpack.c.l.b16 %v478
        %v579 = vunpack.c.h.b16 %v478
        %v580 = vunpack.c.l.b16 %v479
        %v581 = vunpack.c.h.b16 %v479
        %v582 = vunpack.c.l.b16 %v480
        %v583 = vunpack.c.h.b16 %v480
        %v584 = vunpack.c.l.b16 %v481
        %v585 = vunpack.c.h.b16 %v481
        %v586 = vunpack.c.l.b16 %v482
        %v587 = vunpack.c.h.b16 %v482
        %v588 = vunpack.c.l.b16 %v483
        %v589 = vunpack.c.h.b16 %v483
        %v590 = vunpack.c.l.b16 %v484
        %v591 = vunpack.c.h.b16 %v484
        %v592 = vunpack.c.l.b16 %v485
        %v593 = vunpack.c.h.b16 %v485
        %v594 = vpack.c.b16 %v532, %v530
        %v595 = vpack.c.b16 %v533, %v531
        %v596 = vpack.c.b16 %v536, %v534
        %v597 = vpack.c.b16 %v537, %v535
        %v598 = vpack.c.b16 %v540, %v538
        %v599 = vpack.c.b16 %v541, %v539
        %v600 = vpack.c.b16 %v544, %v542
        %v601 = vpack.c.b16 %v545, %v543
        %v602 = vpack.c.b16 %v548, %v546
        %v603 = vpack.c.b16 %v549, %v547
        %v604 = vpack.c.b16 %v552, %v550
        %v605 = vpack.c.b16 %v553, %v551
        %v606 = vpack.c.b16 %v556, %v554
        %v607 = vpack.c.b16 %v557, %v555
        %v608 = vpack.c.b16 %v560, %v558
        %v609 = vpack.c.b16 %v561, %v559
        %v610 = vpack.c.b16 %v564, %v562
        %v611 = vpack.c.b16 %v565, %v563
        %v612 = vpack.c.b16 %v568, %v566
        %v613 = vpack.c.b16 %v569, %v567
        %v614 = vpack.c.b16 %v572, %v570
        %v615 = vpack.c.b16 %v573, %v571
        %v616 = vpack.c.b16 %v576, %v574
        %v617 = vpack.c.b16 %v577, %v575
        %v618 = vpack.c.b16 %v580, %v578
        %v619 = vpack.c.b16 %v581, %v579
        %v620 = vpack.c.b16 %v584, %v582
        %v621 = vpack.c.b16 %v585, %v583
        %v622 = vpack.c.b16 %v588, %v586
        %v623 = vpack.c.b16 %v589, %v587
        %v624 = vpack.c.b16 %v592, %v590
        %v625 = vpack.c.b16 %v593, %v591
        %658 = vmatprep.subr.bf16.mxu0 %v595
        %659 = vmatpush1.bf16.msra.mxu0 %v594
        %660 = vmatprep.subr.bf16.mxu0 %v597
        %661 = vmatpush1.bf16.msra.mxu0 %v596
        %662 = vmatprep.subr.bf16.mxu0 %v599
        %663 = vmatpush1.bf16.msra.mxu0 %v598
        %664 = vmatprep.subr.bf16.mxu0 %v601
        %665 = vmatpush1.bf16.msra.mxu0 %v600
        %666 = vmatprep.subr.bf16.mxu0 %v603
        %667 = vmatpush1.bf16.msra.mxu0 %v602
        %668 = vmatprep.subr.bf16.mxu0 %v605
        %669 = vmatpush1.bf16.msra.mxu0 %v604
        %670 = vmatprep.subr.bf16.mxu0 %v607
        %671 = vmatpush1.bf16.msra.mxu0 %v606
        %672 = vmatprep.subr.bf16.mxu0 %v609
        %673 = vmatpush1.bf16.msra.mxu0 %v608
        %674 = vmatprep.subr.bf16.mxu0 %v611
        %675 = vmatpush1.bf16.msra.mxu0 %v610
        %676 = vmatprep.subr.bf16.mxu0 %v613
        %677 = vmatpush1.bf16.msra.mxu0 %v612
        %678 = vmatprep.subr.bf16.mxu0 %v615
        %679 = vmatpush1.bf16.msra.mxu0 %v614
        %680 = vmatprep.subr.bf16.mxu0 %v617
        %681 = vmatpush1.bf16.msra.mxu0 %v616
        %682 = vmatprep.subr.bf16.mxu0 %v619
        %683 = vmatpush1.bf16.msra.mxu0 %v618
        %684 = vmatprep.subr.bf16.mxu0 %v621
        %685 = vmatpush1.bf16.msra.mxu0 %v620
        %686 = vmatprep.subr.bf16.mxu0 %v623
        %687 = vmatpush1.bf16.msra.mxu0 %v622
        %688 = vmatprep.subr.bf16.mxu0 %v625
        %689 = vmatpush1.bf16.msra.mxu0 %v624
        %690 = vmatprep.mubr.bf16.mxu0 %v451
        %691 = vmatmul.mubr.bf16.gmra.mrb[0].mxu0 %v450
        %v692 = vpop.f32.mrb[0].mxu0
        %v693 = vadd.f32 %v491, %v692
        %v694 = vpop.f32.mrb[0].mxu0
        %v695 = vadd.f32 %v495, %v694
        %v696 = vpop.f32.mrb[0].mxu0
        %v697 = vadd.f32 %v491, %v696
        %v698 = vpop.f32.mrb[0].mxu0
        %v699 = vadd.f32 %v495, %v698
        %700 = vmatprep.mubr.bf16.mxu0 %v453
        %701 = vmatmul.mubr.bf16.gmra.mrb[0].mxu0 %v452
        %v702 = vpop.f32.mrb[0].mxu0
        %v703 = vadd.f32 %v491, %v702
        %v704 = vpop.f32.mrb[0].mxu0
        %v705 = vadd.f32 %v495, %v704
        %v706 = vpop.f32.mrb[0].mxu0
        %v707 = vadd.f32 %v491, %v706
        %v708 = vpop.f32.mrb[0].mxu0
        %v709 = vadd.f32 %v495, %v708
        %710 = vdwg.mxu0
        %v711 = vmax.f32 %v693, 0.0
        %v712 = vmax.f32 %v695, 0.0
        %v713 = vmax.f32 %v697, 0.0
        %v714 = vmax.f32 %v699, 0.0
        %v715 = vmax.f32 %v703, 0.0
        %v716 = vmax.f32 %v705, 0.0
        %v717 = vmax.f32 %v707, 0.0
        %v718 = vmax.f32 %v709, 0.0
        %v719 = vpack.c.bf16 %v713, %v711
        %v720 = vpack.c.bf16 %v714, %v712
        %v721 = vpack.c.bf16 %v717, %v715
        %v722 = vpack.c.bf16 %v718, %v716
        %v723 = vld [vmem:[%s5] sm:$0xf]
        %v724 = vld [vmem:[%s5 + $0x4] sm:$0xf]
        %v725 = vld [vmem:[%s5 + $0x8] sm:$0xf]
        %v726 = vld [vmem:[%s5 + $0xc] sm:$0xf]
        %v727 = vld [vmem:[%s5 + $0x10] sm:$0xf]
        %v728 = vld [vmem:[%s5 + $0x14] sm:$0xf]
        %v729 = vld [vmem:[%s5 + $0x18] sm:$0xf]
        %v730 = vld [vmem:[%s5 + $0x1c] sm:$0xf]
        %v731 = vld [vmem:[%s5 + $0x20] sm:$0xf]
        %v732 = vld [vmem:[%s5 + $0x24] sm:$0xf]
        %v733 = vld [vmem:[%s5 + $0x28] sm:$0xf]
        %v734 = vld [vmem:[%s5 + $0x2c] sm:$0xf]
        %v735 = vld [vmem:[%s5 + $0x30] sm:$0xf]
        %v736 = vld [vmem:[%s5 + $0x34] sm:$0xf]
        %v737 = vld [vmem:[%s5 + $0x38] sm:$0xf]
        %v738 = vld [vmem:[%s5 + $0x3c] sm:$0xf]
        %v739 = vld [vmem:[%s5 + $0x40] sm:$0xf]
        %v740 = vld [vmem:[%s5 + $0x44] sm:$0xf]
        %v741 = vld [vmem:[%s5 + $0x48] sm:$0xf]
        %v742 = vld [vmem:[%s5 + $0x4c] sm:$0xf]
        %v743 = vld [vmem:[%s5 + $0x50] sm:$0xf]
        %v744 = vld [vmem:[%s5 + $0x54] sm:$0xf]
        %v745 = vld [vmem:[%s5 + $0x58] sm:$0xf]
        %v746 = vld [vmem:[%s5 + $0x5c] sm:$0xf]
        %v747 = vld [vmem:[%s5 + $0x60] sm:$0xf]
        %v748 = vld [vmem:[%s5 + $0x64] sm:$0xf]
        %v749 = vld [vmem:[%s5 + $0x68] sm:$0xf]
        %v750 = vld [vmem:[%s5 + $0x6c] sm:$0xf]
        %v751 = vld [vmem:[%s5 + $0x70] sm:$0xf]
        %v752 = vld [vmem:[%s5 + $0x74] sm:$0xf]
        %v753 = vld [vmem:[%s5 + $0x78] sm:$0xf]
        %v754 = vld [vmem:[%s5 + $0x7c] sm:$0xf]
        %v755 = vld [vmem:[%s6] sm:$0x1]
        %v757 = vlaneseq
        %v758 = vshrl.u32 %v757, 7
        %v759 = vsub.s32 0, %v758
        %v760 = vrot.slane %v755, %v759
        %v794 = vunpack.c.l.b16 %v723
        %v795 = vunpack.c.l.b16 %v724
        %v796 = vunpack.c.l.b16 %v725
        %v797 = vunpack.c.l.b16 %v726
        %v798 = vunpack.c.l.b16 %v727
        %v799 = vunpack.c.l.b16 %v728
        %v800 = vunpack.c.l.b16 %v729
        %v801 = vunpack.c.l.b16 %v730
        %v802 = vunpack.c.l.b16 %v731
        %v803 = vunpack.c.l.b16 %v732
        %v804 = vunpack.c.l.b16 %v733
        %v805 = vunpack.c.l.b16 %v734
        %v806 = vunpack.c.l.b16 %v735
        %v807 = vunpack.c.l.b16 %v736
        %v808 = vunpack.c.l.b16 %v737
        %v809 = vunpack.c.l.b16 %v738
        %v810 = vunpack.c.l.b16 %v739
        %v811 = vunpack.c.l.b16 %v740
        %v812 = vunpack.c.l.b16 %v741
        %v813 = vunpack.c.l.b16 %v742
        %v814 = vunpack.c.l.b16 %v743
        %v815 = vunpack.c.l.b16 %v744
        %v816 = vunpack.c.l.b16 %v745
        %v817 = vunpack.c.l.b16 %v746
        %v818 = vunpack.c.l.b16 %v747
        %v819 = vunpack.c.l.b16 %v748
        %v820 = vunpack.c.l.b16 %v749
        %v821 = vunpack.c.l.b16 %v750
        %v822 = vunpack.c.l.b16 %v751
        %v823 = vunpack.c.l.b16 %v752
        %v824 = vunpack.c.l.b16 %v753
        %v825 = vunpack.c.l.b16 %v754
        %v826 = vpack.c.b16 %v795, %v794
        %v827 = vpack.c.b16 %v797, %v796
        %v828 = vpack.c.b16 %v799, %v798
        %v829 = vpack.c.b16 %v801, %v800
        %v830 = vpack.c.b16 %v803, %v802
        %v831 = vpack.c.b16 %v805, %v804
        %v832 = vpack.c.b16 %v807, %v806
        %v833 = vpack.c.b16 %v809, %v808
        %v834 = vpack.c.b16 %v811, %v810
        %v835 = vpack.c.b16 %v813, %v812
        %v836 = vpack.c.b16 %v815, %v814
        %v837 = vpack.c.b16 %v817, %v816
        %v838 = vpack.c.b16 %v819, %v818
        %v839 = vpack.c.b16 %v821, %v820
        %v840 = vpack.c.b16 %v823, %v822
        %v841 = vpack.c.b16 %v825, %v824
        %858 = vmatprep.subr.bf16.mxu0 0
        %859 = vmatpush1.bf16.msra.mxu0 %v826
        %860 = vmatprep.subr.bf16.mxu0 0
        %861 = vmatpush1.bf16.msra.mxu0 %v827
        %862 = vmatprep.subr.bf16.mxu0 0
        %863 = vmatpush1.bf16.msra.mxu0 %v828
        %864 = vmatprep.subr.bf16.mxu0 0
        %865 = vmatpush1.bf16.msra.mxu0 %v829
        %866 = vmatprep.subr.bf16.mxu0 0
        %867 = vmatpush1.bf16.msra.mxu0 %v830
        %868 = vmatprep.subr.bf16.mxu0 0
        %869 = vmatpush1.bf16.msra.mxu0 %v831
        %870 = vmatprep.subr.bf16.mxu0 0
        %871 = vmatpush1.bf16.msra.mxu0 %v832
        %872 = vmatprep.subr.bf16.mxu0 0
        %873 = vmatpush1.bf16.msra.mxu0 %v833
        %874 = vmatprep.subr.bf16.mxu0 0
        %875 = vmatpush1.bf16.msra.mxu0 %v834
        %876 = vmatprep.subr.bf16.mxu0 0
        %877 = vmatpush1.bf16.msra.mxu0 %v835
        %878 = vmatprep.subr.bf16.mxu0 0
        %879 = vmatpush1.bf16.msra.mxu0 %v836
        %880 = vmatprep.subr.bf16.mxu0 0
        %881 = vmatpush1.bf16.msra.mxu0 %v837
        %882 = vmatprep.subr.bf16.mxu0 0
        %883 = vmatpush1.bf16.msra.mxu0 %v838
        %884 = vmatprep.subr.bf16.mxu0 0
        %885 = vmatpush1.bf16.msra.mxu0 %v839
        %886 = vmatprep.subr.bf16.mxu0 0
        %887 = vmatpush1.bf16.msra.mxu0 %v840
        %888 = vmatprep.subr.bf16.mxu0 0
        %889 = vmatpush1.bf16.msra.mxu0 %v841
        %890 = vmatprep.mubr.bf16.mxu0 %v720
        %891 = vmatmul.mubr.bf16.gmra.mrb[0].mxu0 %v719
        %v892 = vpop.f32.mrb[0].mxu0
        %v893 = vadd.f32 %v760, %v892
        %v894 = vpop.f32.mrb[0].mxu0
        %v895 = vpop.f32.mrb[0].mxu0
        %v896 = vadd.f32 %v760, %v895
        %v897 = vpop.f32.mrb[0].mxu0
        %898 = vmatprep.mubr.bf16.mxu0 %v722
        %899 = vmatmul.mubr.bf16.gmra.mrb[0].mxu0 %v721
        %v900 = vpop.f32.mrb[0].mxu0
        %v901 = vadd.f32 %v760, %v900
        %v902 = vpop.f32.mrb[0].mxu0
        %v903 = vpop.f32.mrb[0].mxu0
        %v904 = vadd.f32 %v760, %v903
        %v905 = vpop.f32.mrb[0].mxu0
        %906 = vdwg.mxu0
        %vm907 = vcmask 97280
        %908 = vst.msk [vmem:[%s295] sm:$0xff] %vm907, %v893
        %909 = vst.msk [vmem:[%s295 + $0x8] sm:$0xff] %vm907, %v896
        %910 = vst.msk [vmem:[%s295 + $0x10] sm:$0xff] %vm907, %v901
        %911 = vst.msk [vmem:[%s295 + $0x18] sm:$0xff] %vm907, %v904
        %s912 = sand.u32 %s179, 1
        %s913 = sand.u32 %s179, 1
        %s914 = smul.addr %s913, 32
        %s915 = scalar_lea.vmem [#allocation4], %s914
        // Predicated region
        $region53: #{tpu_custom_call.1} parent=47 // pred_check
          %p916 = pneg %p189
        $region54: #{tpu_custom_call.1} parent=47 // pred_check_branch
          %918 = sbr.rel (%p916) target = $region56
        $region55: #{tpu_custom_call.1} parent=47 // pred_region
          %s919 = smul.u32 4, %s19
          %s920 = ssub.s32 7, %s919
          %p921 = scmp.lt.s32.totalorder %s920, 4
          %s922 = scalar_select %p921, %s920, 4
          %s923 = smul.u32 128, %s922
          %p924 = scmp.ne.s32.totalorder 0, %s923
          %s925 = smul.addr %s919, 8
          %s926 = scalar_lea.vmem %s7, %s925
          // Predicated region
          $region57: #{tpu_custom_call.1} parent=55 // pred_check
            %p927 = pneg %p924
          $region58: #{tpu_custom_call.1} parent=55 // pred_check_branch
            %929 = sbr.rel (%p927) target = $region60
          $region59: #{tpu_custom_call.1} parent=55 // pred_region
            // Predicated region
            $region61: #{tpu_custom_call.1} parent=59 // pred_check
              _
            $region62: #{tpu_custom_call.1} parent=59 // pred_check_branch
              %931 = sbr.rel (0) target = $region64
            $region63: #{tpu_custom_call.1} parent=59 // pred_region
              // Predicated region
              $region83: #{tpu_custom_call.1} parent=63 // pred_check
                _
              $region84: #{tpu_custom_call.1} parent=63 // pred_check_branch
                %986 = sbr.rel (0) target = $region86
              $region85: #{tpu_custom_call.1} parent=63 // pred_region
                %s987 = sshrl.u32 %s922, 2
                // While loop
                $region87: #{tpu_custom_call.1} parent=85 // loop_pre_header
                  _
                $region88: #{tpu_custom_call.1} parent=85 // loop_header
                  %s989 = sphi 0, %s991
                  %p990 = scmp.ge.s32.totalorder %s989, %s987
                  %s994 = sphi 0, %s1007
                  %s995 = sphi %s915, %s1010
                  %s996 = sphi %s926, %s1011
                $region89: #{tpu_custom_call.1} parent=85 // loop_header_branch
                  %993 = sbr.rel (%p990) target = $region93
                $region90: #{tpu_custom_call.1} parent=85 // loop_body
                  %v997 = vld [vmem:[%s995] sm:$0xff]
                  %998 = vst [vmem:[%s996] sm:$0xff] %v997
                  %v999 = vld [vmem:[%s995 + $0x8] sm:$0xff]
                  %1000 = vst [vmem:[%s996 + $0x8] sm:$0xff] %v999
                  %v1001 = vld [vmem:[%s995 + $0x10] sm:$0xff]
                  %1002 = vst [vmem:[%s996 + $0x10] sm:$0xff] %v1001
                  %v1003 = vld [vmem:[%s995 + $0x18] sm:$0xff]
                  %1004 = vst [vmem:[%s996 + $0x18] sm:$0xff] %v1003
                  %s1005 = sadd.s32 1, %s994
                  %p1006 = scmp.ge.s32.totalorder %s1005, %s987
                  %s1007 = scalar_select %p1006, 0, %s1005
                  %s1008 = smul.u32 %s1007, 32
                  %s1009 = smul.u32 %s1007, 32
                  %s1010 = scalar_lea.vmem %s915, %s1008 [#allocation4]
                  %s1011 = scalar_lea.vmem %s926, %s1009
                $region91: #{tpu_custom_call.1} parent=85 // loop_footer
                  %s991 = sadd.s32 %s989, 1
                $region92: #{tpu_custom_call.1} parent=85 // loop_footer_branch
                  %988 = sbr.rel target = $region88
                $region93: #{tpu_custom_call.1} parent=85 // loop_exit
                  _
                %s1012 = sshrl.u32 %s922, 2
                %s1013 = sand.u32 %s922, 3
                %s1014 = smul.u32 %s1012, 4
                %s1015 = smul.u32 8, %s1014
                %s1016 = scalar_lea.vmem %s915, %s1015 [#allocation4]
                %s1017 = smul.u32 8, %s1014
                %s1018 = scalar_lea.vmem %s926, %s1017
                // While loop
                $region94: #{tpu_custom_call.1} parent=85 // loop_pre_header
                  _
                $region95: #{tpu_custom_call.1} parent=85 // loop_header
                  %s1020 = sphi 0, %s1022
                  %p1021 = scmp.ge.s32.totalorder %s1020, %s1013
                  %s1025 = sphi 0, %s1032
                  %s1026 = sphi %s1016, %s1035
                  %s1027 = sphi %s1018, %s1036
                $region96: #{tpu_custom_call.1} parent=85 // loop_header_branch
                  %1024 = sbr.rel (%p1021) target = $region100
                $region97: #{tpu_custom_call.1} parent=85 // loop_body
                  %v1028 = vld [vmem:[%s1026] sm:$0xff]
                  %1029 = vst [vmem:[%s1027] sm:$0xff] %v1028
                  %s1030 = sadd.s32 1, %s1025
                  %p1031 = scmp.ge.s32.totalorder %s1030, %s1013
                  %s1032 = scalar_select %p1031, 0, %s1030
                  %s1033 = smul.u32 %s1032, 8
                  %s1034 = smul.u32 %s1032, 8
                  %s1035 = scalar_lea.vmem %s1016, %s1033 [#allocation4]
                  %s1036 = scalar_lea.vmem %s1018, %s1034
                $region98: #{tpu_custom_call.1} parent=85 // loop_footer
                  %s1022 = sadd.s32 %s1020, 1
                $region99: #{tpu_custom_call.1} parent=85 // loop_footer_branch
                  %1019 = sbr.rel target = $region95
                $region100: #{tpu_custom_call.1} parent=85 // loop_exit
                  _
              $region86: #{tpu_custom_call.1} parent=63 // pred_fallthru
                _
              // Predicated region
              $region101: #{tpu_custom_call.1} parent=63 // pred_check
                _
              $region102: #{tpu_custom_call.1} parent=63 // pred_check_branch
                %1038 = sbr.rel target = $region104
              $region103: #{tpu_custom_call.1} parent=63 // pred_region
                _
              $region104: #{tpu_custom_call.1} parent=63 // pred_fallthru
                _
            $region64: #{tpu_custom_call.1} parent=59 // pred_fallthru
              _
            // Predicated region
            $region65: #{tpu_custom_call.1} parent=59 // pred_check
              _
            $region66: #{tpu_custom_call.1} parent=59 // pred_check_branch
              %933 = sbr.rel target = $region68
            $region67: #{tpu_custom_call.1} parent=59 // pred_region
              %s935 = sshrl.u32 %s922, 2
              // While loop
              $region69: #{tpu_custom_call.1} parent=67 // loop_pre_header
                _
              $region70: #{tpu_custom_call.1} parent=67 // loop_header
                %s937 = sphi 0, %s939
                %p938 = scmp.ge.s32.totalorder %s937, %s935
                %s942 = sphi 0, %s955
                %s943 = sphi %s915, %s958
                %s944 = sphi %s926, %s959
              $region71: #{tpu_custom_call.1} parent=67 // loop_header_branch
                %941 = sbr.rel (%p938) target = $region75
              $region72: #{tpu_custom_call.1} parent=67 // loop_body
                %v945 = vld [vmem:[%s943] sm:$0xff]
                %946 = vst [vmem:[%s944] sm:$0xff] %v945
                %v947 = vld [vmem:[%s943 + $0x8] sm:$0xff]
                %948 = vst [vmem:[%s944 + $0x8] sm:$0xff] %v947
                %v949 = vld [vmem:[%s943 + $0x10] sm:$0xff]
                %950 = vst [vmem:[%s944 + $0x10] sm:$0xff] %v949
                %v951 = vld [vmem:[%s943 + $0x18] sm:$0xff]
                %952 = vst [vmem:[%s944 + $0x18] sm:$0xff] %v951
                %s953 = sadd.s32 1, %s942
                %p954 = scmp.ge.s32.totalorder %s953, %s935
                %s955 = scalar_select %p954, 0, %s953
                %s956 = smul.u32 %s955, 32
                %s957 = smul.u32 %s955, 32
                %s958 = scalar_lea.vmem %s915, %s956 [#allocation4]
                %s959 = scalar_lea.vmem %s926, %s957
              $region73: #{tpu_custom_call.1} parent=67 // loop_footer
                %s939 = sadd.s32 %s937, 1
              $region74: #{tpu_custom_call.1} parent=67 // loop_footer_branch
                %936 = sbr.rel target = $region70
              $region75: #{tpu_custom_call.1} parent=67 // loop_exit
                _
              %s960 = sshrl.u32 %s922, 2
              %s961 = sand.u32 %s922, 3
              %s962 = smul.u32 %s960, 4
              %s963 = smul.u32 8, %s962
              %s964 = scalar_lea.vmem %s915, %s963 [#allocation4]
              %s965 = smul.u32 8, %s962
              %s966 = scalar_lea.vmem %s926, %s965
              // While loop
              $region76: #{tpu_custom_call.1} parent=67 // loop_pre_header
                _
              $region77: #{tpu_custom_call.1} parent=67 // loop_header
                %s968 = sphi 0, %s970
                %p969 = scmp.ge.s32.totalorder %s968, %s961
                %s973 = sphi 0, %s980
                %s974 = sphi %s964, %s983
                %s975 = sphi %s966, %s984
              $region78: #{tpu_custom_call.1} parent=67 // loop_header_branch
                %972 = sbr.rel (%p969) target = $region82
              $region79: #{tpu_custom_call.1} parent=67 // loop_body
                %v976 = vld [vmem:[%s974] sm:$0xff]
                %977 = vst [vmem:[%s975] sm:$0xff] %v976
                %s978 = sadd.s32 1, %s973
                %p979 = scmp.ge.s32.totalorder %s978, %s961
                %s980 = scalar_select %p979, 0, %s978
                %s981 = smul.u32 %s980, 8
                %s982 = smul.u32 %s980, 8
                %s983 = scalar_lea.vmem %s964, %s981 [#allocation4]
                %s984 = scalar_lea.vmem %s966, %s982
              $region80: #{tpu_custom_call.1} parent=67 // loop_footer
                %s970 = sadd.s32 %s968, 1
              $region81: #{tpu_custom_call.1} parent=67 // loop_footer_branch
                %967 = sbr.rel target = $region77
              $region82: #{tpu_custom_call.1} parent=67 // loop_exit
                _
            $region68: #{tpu_custom_call.1} parent=59 // pred_fallthru
              _
          $region60: #{tpu_custom_call.1} parent=55 // pred_fallthru
            _
          %1039 = vnop
        $region56: #{tpu_custom_call.1} parent=47 // pred_fallthru
          _
      $region48: #{tpu_custom_call.1} parent=5 // pred_fallthru
        _
      %p1040 = scmp.le.s32.totalorder 2, %s14
      // Predicated region
      $region105: #{tpu_custom_call.1} parent=5 // pred_check
        %p1041 = pneg %p1040
      $region106: #{tpu_custom_call.1} parent=5 // pred_check_branch
        %1043 = sbr.rel (%p1041) target = $region108
      $region107: #{tpu_custom_call.1} parent=5 // pred_region
        %s1044 = ssub.s32 %s14, 2
        // Predicated region
        $region109: #{tpu_custom_call.1} parent=107 // pred_check
          %p1045 = pneg %p195
        $region110: #{tpu_custom_call.1} parent=107 // pred_check_branch
          %1047 = sbr.rel (%p1045) target = $region112
        $region111: #{tpu_custom_call.1} parent=107 // pred_region
          %s1048 = sand.u32 %s180, 1
          %s1049 = sand.u32 %s180, 1
          %s1050 = smul.addr %s1049, 32
          %s1051 = scalar_lea.vmem [#allocation4], %s1050
        $region112: #{tpu_custom_call.1} parent=107 // pred_fallthru
          _
      $region108: #{tpu_custom_call.1} parent=5 // pred_fallthru
        _
    $region6: #{tpu_custom_call.1} parent=1 // loop_footer
      %s18 = sadd.s32 1, %s14
    $region7: #{tpu_custom_call.1} parent=1 // loop_footer_branch
      %13 = sbr.rel target = $region3
    $region8: #{tpu_custom_call.1} parent=1 // loop_exit
      _
    %1052 = vsyncpa [#allocation3], 1
    %s1053 = scalar_lea.sflag [#allocation3], 1
    %1054 = vsyncpa %s1053, 1

</llo_original>
